<compile_context>
chip_gen: v7x
topology: tpu7x:2x2x1
jax: 0.10.0
libtpu: 0.0.40
codegen_flags: <defaults>
</compile_context>

<pallas_src>
import numpy as np
import jax
import jax.numpy as jnp
from jax.experimental import pallas as pl
from jax.experimental.pallas import tpu as pltpu

WEIGHT_REGULARIZER = 1e-06
DROPOUT_REGULARIZER = 0.001
INIT_MIN = 0.001
INIT_MAX = 0.001

_EPS = 1e-07
_TEMP = 0.1


def _round_up(v, m):
    return ((v + m - 1) // m) * m


def _concrete_dropout_linear_kernel(plogit_ref, x_ref, u_ref, wt_ref, b_ref, y_ref):
    # p-dependent scalars: (1,1) values, negligible per-tile cost.
    p = jax.nn.sigmoid(plogit_ref[...])                        # (1, 1)
    logit_p = jnp.log(p + _EPS) - jnp.log(1.0 - p + _EPS)      # (1, 1)
    inv_retain = 1.0 / (1.0 - p)                               # (1, 1), exact

    # ---- concrete dropout elementwise hot path (1 log + 1 sigmoid / elem) ----
    x = x_ref[...]                                             # (TB, D_in) f32
    u = u_ref[...]                                             # (TB, D_in) U[0,1)
    noise_logit = jnp.log((u + _EPS) / (1.0 - u + _EPS))       # single log per elem
    drop_logit = logit_p + noise_logit
    # random_tensor = 1 - sigmoid(z / t) == sigmoid(-z / t)
    random_tensor = jax.nn.sigmoid(-(drop_logit * (1.0 / _TEMP)))
    x_dropped = (x * random_tensor).astype(jnp.bfloat16)       # bf16 MXU operand

    # ---- wrapped Linear: (TB, D_in) @ (D_in, D_out_pad), f32 accumulate ------
    y = jnp.dot(x_dropped, wt_ref[...], preferred_element_type=jnp.float32)
    # fold the 1/(1-p) rescale onto the output side (scalar commutes), add bias
    y_ref[...] = (y * inv_retain + b_ref[...]).astype(y_ref.dtype)


def _choose_tile_b(B, D_in, D_out_pad):
    # VMEM bytes per batch row: double-buffered x + noise + y tiles plus
    # ~4 f32 elementwise temporaries of the x tile.
    per_row = 4 * (2 * D_in + 2 * D_in + 2 * D_out_pad + 4 * D_in)
    budget = 16 * 1024 * 1024            # conservative: fits v5e scoped default too
    tile = budget // max(per_row, 1)
    tile = max(8, min(512, (tile // 8) * 8))
    tile = min(tile, _round_up(B, 8))
    return int(tile), int(per_row)


def concrete_dropout_forward(x, p_logit, weight, bias, key):
    """ConcreteDropout.forward(x, layer) with layer = nn.Linear(weight, bias).

    x: (B, D_in); weight: (D_out, D_in) (PyTorch layout); bias: (D_out,);
    p_logit: (1,).  Returns (layer_output (B, D_out), regularization (1,)).
    """
    B, D_in = x.shape
    D_out = weight.shape[0]

    # torch.rand_like(x): uniform noise, streamed into the kernel.
    noise = jax.random.uniform(key, (B, D_in), dtype=jnp.float32)

    # ---- parameter prep (glue; in a real model hoist to param-prep time) ----
    D_out_pad = _round_up(D_out, 128)    # lane-dense output stores / MXU tile
    w_t = jnp.zeros((D_in, D_out_pad), jnp.bfloat16).at[:, :D_out].set(
        weight.T.astype(jnp.bfloat16))
    b2 = jnp.zeros((1, D_out_pad), jnp.float32).at[:, :D_out].set(
        bias.reshape(1, D_out).astype(jnp.float32))
    plogit2 = p_logit.reshape(1, 1).astype(jnp.float32)

    tile_b, per_row = _choose_tile_b(B, D_in, D_out_pad)
    n_tiles = int(pl.cdiv(B, tile_b))
    B_pad = n_tiles * tile_b
    if B_pad != B:
        x = jnp.pad(x, ((0, B_pad - B), (0, 0)))
        noise = jnp.pad(noise, ((0, B_pad - B), (0, 0)))

    vmem_limit = int(min(max(per_row * tile_b + D_in * D_out_pad * 2
                             + 2 * D_out_pad * 4 + (2 << 20), 4 << 20), 48 << 20))

    cost = pl.CostEstimate(
        flops=2 * B_pad * D_in * D_out_pad,
        transcendentals=3 * B_pad * D_in,
        bytes_accessed=(2 * B_pad * D_in * 4            # x + noise
                        + D_in * D_out_pad * 2          # W^T (bf16)
                        + D_out_pad * 4                 # bias
                        + B_pad * D_out_pad * 4),       # y
    )

    y_pad = pl.pallas_call(
        _concrete_dropout_linear_kernel,
        out_shape=jax.ShapeDtypeStruct((B_pad, D_out_pad), jnp.float32),
        grid=(n_tiles,),
        in_specs=[
            pl.BlockSpec((1, 1), lambda i: (0, 0)),               # p_logit (resident)
            pl.BlockSpec((tile_b, D_in), lambda i: (i, 0)),       # x tile
            pl.BlockSpec((tile_b, D_in), lambda i: (i, 0)),       # noise tile
            pl.BlockSpec((D_in, D_out_pad), lambda i: (0, 0)),    # W^T (resident, bf16)
            pl.BlockSpec((1, D_out_pad), lambda i: (0, 0)),       # bias (resident)
        ],
        out_specs=pl.BlockSpec((tile_b, D_out_pad), lambda i: (i, 0)),
        compiler_params=pltpu.CompilerParams(
            dimension_semantics=("parallel",),
            vmem_limit_bytes=vmem_limit),
        cost_estimate=cost,
    )(plogit2, x, noise, w_t, b2)
    y = y_pad[:B, :D_out]

    # ---- regularization: parameter-only scalar work, hoisted out of kernel ----
    p = jax.nn.sigmoid(p_logit)                                     # (1,)
    sum_of_squares = jnp.sum(weight * weight) + jnp.sum(bias * bias)
    weights_regularizer = WEIGHT_REGULARIZER * sum_of_squares / (1.0 - p)
    input_dimensionality = float(D_in)                              # x[0].numel()
    # NOTE: reproduces PyTorch precedence exactly -- second term is unscaled.
    dropout_regularizer = (DROPOUT_REGULARIZER * input_dimensionality
                           * p * jnp.log(p)
                           + (1.0 - p) * jnp.log(1.0 - p))
    regularization = weights_regularizer + dropout_regularizer      # (1,)
    return y, regularization


if __name__ == "__main__":
    # ---- deterministic parameter / input setup (no checkpoint load) ---------
    B, D_in, D_out = 8, 32, 32
    root = jax.random.PRNGKey(0)
    k_x, k_w, k_b, k_noise = jax.random.split(root, 4)

    x = jax.random.normal(k_x, (B, D_in), dtype=jnp.float32)

    # ConcreteDropout.__init__: p_logit ~ U(logit(init_min), logit(init_max));
    # init_min == init_max == 0.001, so the logit is deterministic.
    lo = float(np.log(INIT_MIN) - np.log(1.0 - INIT_MIN))
    p_logit = jnp.full((1,), lo, dtype=jnp.float32)

    # Wrapped layer = nn.Linear(D_in, D_out): W (D_out, D_in), b (D_out,)
    bound = 1.0 / np.sqrt(D_in)
    weight = jax.random.uniform(k_w, (D_out, D_in), jnp.float32, -bound, bound)
    bias = jax.random.uniform(k_b, (D_out,), jnp.float32, -bound, bound)

    y, reg = concrete_dropout_forward(x, p_logit, weight, bias, k_noise)
    jax.block_until_ready((y, reg))

    assert y.shape == (B, D_out) and reg.shape == (1,)
    assert bool(jnp.all(jnp.isfinite(y))) and bool(jnp.all(jnp.isfinite(reg)))

    # plain-JAX reference with the same noise (bf16-matmul tolerance)
    p_ref = jax.nn.sigmoid(p_logit)[0]
    u = jax.random.uniform(k_noise, (B, D_in), dtype=jnp.float32)
    dl = (jnp.log(p_ref + _EPS) - jnp.log(1.0 - p_ref + _EPS)
          + jnp.log(u + _EPS) - jnp.log(1.0 - u + _EPS))
    rt = 1.0 - jax.nn.sigmoid(dl / _TEMP)
    y_ref = (x * rt / (1.0 - p_ref)) @ weight.T + bias
    assert float(jnp.max(jnp.abs(y - y_ref))) < 5e-2

    print("KERNEL_OK")
</pallas_src>

<mosaic_0001>
module attributes {stable_mosaic.version = 11 : i64} {
  func.func @_concrete_dropout_linear_kernel(%arg0: i32, %arg1: memref<1x1xf32, #tpu.memory_space<vmem>>, %arg2: memref<8x32xf32, #tpu.memory_space<vmem>>, %arg3: memref<8x32xf32, #tpu.memory_space<vmem>>, %arg4: memref<32x128xbf16, #tpu.memory_space<vmem>>, %arg5: memref<1x128xf32, #tpu.memory_space<vmem>>, %arg6: memref<8x128xf32, #tpu.memory_space<vmem>>) attributes {dimension_semantics = [#tpu.dimension_semantics<parallel>], iteration_bounds = array<i64: 1>, scalar_prefetch = 0 : i64, scratch_operands = 0 : i64, tpu.core_type = #tpu.core_type<tc>, window_params = [{pipeline_mode = #tpu.pipeline_mode<synchronous>, transform_indices = @transform_0, window_bounds = array<i64: 1, 1>}, {transform_indices = @transform_1, window_bounds = array<i64: 8, 32>}, {transform_indices = @transform_2, window_bounds = array<i64: 8, 32>}, {pipeline_mode = #tpu.pipeline_mode<synchronous>, transform_indices = @transform_3, window_bounds = array<i64: 32, 128>}, {pipeline_mode = #tpu.pipeline_mode<synchronous>, transform_indices = @transform_4, window_bounds = array<i64: 1, 128>}, {transform_indices = @transform_5, window_bounds = array<i64: 8, 128>}]} {
    %c0 = arith.constant 0 : index
    %c0_0 = arith.constant 0 : index
    %0 = vector.load %arg1[%c0, %c0_0] : memref<1x1xf32, #tpu.memory_space<vmem>>, vector<1x1xf32>
    %1 = arith.negf %0 : vector<1x1xf32>
    %2 = math.exp %1 : vector<1x1xf32>
    %cst = arith.constant 1.000000e+00 : f32
    %3 = vector.broadcast %cst : f32 to vector<1x1xf32>
    %4 = arith.addf %3, %2 : vector<1x1xf32>
    %5 = arith.divf %3, %4 : vector<1x1xf32>
    %cst_1 = arith.constant 1.000000e-07 : f32
    %6 = vector.broadcast %cst_1 : f32 to vector<1x1xf32>
    %7 = arith.addf %5, %6 : vector<1x1xf32>
    %8 = math.log %7 : vector<1x1xf32>
    %cst_2 = arith.constant 1.000000e+00 : f32
    %9 = vector.broadcast %cst_2 : f32 to vector<1x1xf32>
    %10 = arith.subf %9, %5 : vector<1x1xf32>
    %cst_3 = arith.constant 1.000000e-07 : f32
    %11 = vector.broadcast %cst_3 : f32 to vector<1x1xf32>
    %12 = arith.addf %10, %11 : vector<1x1xf32>
    %13 = math.log %12 : vector<1x1xf32>
    %14 = arith.subf %8, %13 : vector<1x1xf32>
    %cst_4 = arith.constant 1.000000e+00 : f32
    %15 = vector.broadcast %cst_4 : f32 to vector<1x1xf32>
    %16 = arith.subf %15, %5 : vector<1x1xf32>
    %cst_5 = arith.constant 1.000000e+00 : f32
    %17 = vector.broadcast %cst_5 : f32 to vector<1x1xf32>
    %18 = arith.divf %17, %16 : vector<1x1xf32>
    %c0_6 = arith.constant 0 : index
    %c0_7 = arith.constant 0 : index
    %19 = vector.load %arg2[%c0_6, %c0_7] : memref<8x32xf32, #tpu.memory_space<vmem>>, vector<8x32xf32>
    %c0_8 = arith.constant 0 : index
    %c0_9 = arith.constant 0 : index
    %20 = vector.load %arg3[%c0_8, %c0_9] : memref<8x32xf32, #tpu.memory_space<vmem>>, vector<8x32xf32>
    %cst_10 = arith.constant 1.000000e-07 : f32
    %21 = vector.broadcast %cst_10 : f32 to vector<8x32xf32>
    %22 = arith.addf %20, %21 : vector<8x32xf32>
    %cst_11 = arith.constant 1.000000e+00 : f32
    %23 = vector.broadcast %cst_11 : f32 to vector<8x32xf32>
    %24 = arith.subf %23, %20 : vector<8x32xf32>
    %cst_12 = arith.constant 1.000000e-07 : f32
    %25 = vector.broadcast %cst_12 : f32 to vector<8x32xf32>
    %26 = arith.addf %24, %25 : vector<8x32xf32>
    %27 = arith.divf %22, %26 : vector<8x32xf32>
    %28 = math.log %27 : vector<8x32xf32>
    %29 = vector.broadcast %14 : vector<1x1xf32> to vector<8x32xf32>
    %30 = arith.addf %29, %28 : vector<8x32xf32>
    %cst_13 = arith.constant 1.000000e+01 : f32
    %31 = vector.broadcast %cst_13 : f32 to vector<8x32xf32>
    %32 = arith.mulf %30, %31 : vector<8x32xf32>
    %cst_14 = arith.constant 0.000000e+00 : f32
    %33 = vector.broadcast %cst_14 : f32 to vector<8x32xf32>
    %34 = arith.subf %33, %32 : vector<8x32xf32>
    %35 = arith.negf %34 : vector<8x32xf32>
    %36 = math.exp %35 : vector<8x32xf32>
    %cst_15 = arith.constant 1.000000e+00 : f32
    %37 = vector.broadcast %cst_15 : f32 to vector<8x32xf32>
    %38 = arith.addf %37, %36 : vector<8x32xf32>
    %39 = arith.divf %37, %38 : vector<8x32xf32>
    %40 = arith.mulf %19, %39 : vector<8x32xf32>
    %41 = arith.truncf %40 : vector<8x32xf32> to vector<8x32xbf16>
    %c0_16 = arith.constant 0 : index
    %c0_17 = arith.constant 0 : index
    %42 = vector.load %arg4[%c0_16, %c0_17] : memref<32x128xbf16, #tpu.memory_space<vmem>>, vector<32x128xbf16>
    %cst_18 = arith.constant dense<0.000000e+00> : vector<8x128xf32>
    %43 = tpu.matmul %41, %42, %cst_18 {dimension_numbers = #tpu.dot_dimension_numbers<[1], [0], [0], [1], [0, 0, 1, 1], [], []>} : vector<8x32xbf16>, vector<32x128xbf16>, vector<8x128xf32> -> vector<8x128xf32>
    %44 = vector.broadcast %18 : vector<1x1xf32> to vector<8x128xf32>
    %45 = arith.mulf %43, %44 : vector<8x128xf32>
    %c0_19 = arith.constant 0 : index
    %c0_20 = arith.constant 0 : index
    %46 = vector.load %arg5[%c0_19, %c0_20] : memref<1x128xf32, #tpu.memory_space<vmem>>, vector<1x128xf32>
    %47 = vector.broadcast %46 : vector<1x128xf32> to vector<8x128xf32>
    %48 = arith.addf %45, %47 : vector<8x128xf32>
    %c0_21 = arith.constant 0 : index
    %c0_22 = arith.constant 0 : index
    %49 = vector.load %arg6[%c0_21, %c0_22] : memref<8x128xf32, #tpu.memory_space<vmem>>, vector<8x128xf32>
    tpu.vector_store %arg6[%c0_21, %c0_22], %48 {strides = array<i32>} : memref<8x128xf32, #tpu.memory_space<vmem>>, vector<8x128xf32>,
    return
  }
  func.func @transform_0(%arg0: i32) -> (i32, i32) {
    %c0_i32 = arith.constant 0 : i32
    %c0_i32_0 = arith.constant 0 : i32
    %c0_i32_1 = arith.constant 0 : i32
    return %c0_i32, %c0_i32_0 : i32, i32
  }
  func.func @transform_1(%arg0: i32) -> (i32, i32) {
    %c0_i32 = arith.constant 0 : i32
    %c0_i32_0 = arith.constant 0 : i32
    return %arg0, %c0_i32 : i32, i32
  }
  func.func @transform_2(%arg0: i32) -> (i32, i32) {
    %c0_i32 = arith.constant 0 : i32
    %c0_i32_0 = arith.constant 0 : i32
    return %arg0, %c0_i32 : i32, i32
  }
  func.func @transform_3(%arg0: i32) -> (i32, i32) {
    %c0_i32 = arith.constant 0 : i32
    %c0_i32_0 = arith.constant 0 : i32
    %c0_i32_1 = arith.constant 0 : i32
    return %c0_i32, %c0_i32_0 : i32, i32
  }
  func.func @transform_4(%arg0: i32) -> (i32, i32) {
    %c0_i32 = arith.constant 0 : i32
    %c0_i32_0 = arith.constant 0 : i32
    %c0_i32_1 = arith.constant 0 : i32
    return %c0_i32, %c0_i32_0 : i32, i32
  }
  func.func @transform_5(%arg0: i32) -> (i32, i32) {
    %c0_i32 = arith.constant 0 : i32
    %c0_i32_0 = arith.constant 0 : i32
    return %arg0, %c0_i32 : i32, i32
  }
}

</mosaic_0001>

<llo_original>
// kernel: tpu_custom_call.1
$region0: #{tpu_custom_call.1}
  #allocation0 [shape = 'u32[]', space=smem, size = 0x4, offset = 0x4, fixed_abs, tag = 'smem constant byte address 0x4 - core index']
  #allocation1 [shape = 'u32[144,128]{1,0:T(1,128)}', space=vmem, size = 0x12000, scoped, tag = 'internal scratch']
  #allocation2 [shape = 'f32[1,1]{1,0:T(1,128)S(1)}', space=vmem, size = 0x200, scoped, tag = 'scoped memory for tpu_custom_call.1']
  %s0 = inlined_call_operand.<no memory space> [shape: f32[1,1], index: 0, kind: input, shape index: {}]
  %s1 = inlined_call_operand.hbm [shape: f32[8,32], index: 1, kind: input, shape index: {}]
  %s2 = inlined_call_operand.hbm [shape: f32[8,32], index: 2, kind: input, shape index: {}]
  %s3 = inlined_call_operand.hbm [shape: bf16[32,128], index: 3, kind: input, shape index: {}]
  %s4 = inlined_call_operand.vmem [shape: f32[1,128], index: 4, kind: input, shape index: {}]
  %s5 = inlined_call_operand.hbm [shape: f32[8,128], index: 5, kind: output, shape index: {}]
  %s6 = sld [smem:[#allocation0]]
  $region42: #{tpu_custom_call.1} parent=0
    _
  %s8 = ssub.s32 1, %s6
  %s9 = scalar_select 0, %s8, %s6
  %v10 = vstv %s0
  %11 = vst [vmem:[#allocation2] sm:$0x1] %v10
  $region1: #{tpu_custom_call.1} parent=0
    #allocation3 [shape = 'u8[4096]{0}', space=vmem, size = 0x1000, scoped, tag = 'input window, operand 1, single buffered']
    #allocation4 [shape = 's32[1]{0}', space=sflag, size = 0x4, scoped, tag = 'scoped memory for tpu_custom_call.1']
    #allocation5 [shape = 's32[1]{0}', space=sflag, size = 0x4, scoped, tag = 'scoped memory for tpu_custom_call.1']
    #allocation6 [shape = 'u8[4096]{0}', space=vmem, size = 0x1000, scoped, tag = 'input window, operand 2, single buffered']
    #allocation7 [shape = 's32[1]{0}', space=sflag, size = 0x4, scoped, tag = 'scoped memory for tpu_custom_call.1']
    #allocation8 [shape = 'u8[8192]{0}', space=vmem, size = 0x2000, scoped, tag = 'input window, operand 3, single buffered']
    #allocation9 [shape = 'u8[4096]{0}', space=vmem, size = 0x1000, scoped, tag = 'output window, operand 0, single buffered']
    %12 = vsyncpa [#allocation4], 0
    %13 = vsyncpa [#allocation7], 0
    %14 = vsyncpa [#allocation5], 0
    // Predicated region
    $region2: #{tpu_custom_call.1} parent=1 // pred_check
      _
    $region3: #{tpu_custom_call.1} parent=1 // pred_check_branch
      %16 = sbr.rel (0) target = $region5
    $region4: #{tpu_custom_call.1} parent=1 // pred_region
      _
    $region5: #{tpu_custom_call.1} parent=1 // pred_fallthru
      _
    // Predicated region
    $region6: #{tpu_custom_call.1} parent=1 // pred_check
      _
    $region7: #{tpu_custom_call.1} parent=1 // pred_check_branch
      %18 = sbr.rel (0) target = $region9
    $region8: #{tpu_custom_call.1} parent=1 // pred_region
      %s20 = ssub.s32 128, 128
      %21 = vsyncadd [#allocation4], %s20
      %s23 = sshll.u32 [#allocation3], 4
      %s24 = int_to_ptr.vmem [resolvable:$true] %s23
      %26 = dma.hbm_to_vmem [thread:$0]  %s1, 128, %s24, [#allocation4]
    $region9: #{tpu_custom_call.1} parent=1 // pred_fallthru
      _
    // Predicated region
    $region10: #{tpu_custom_call.1} parent=1 // pred_check
      _
    $region11: #{tpu_custom_call.1} parent=1 // pred_check_branch
      %28 = sbr.rel (0) target = $region13
    $region12: #{tpu_custom_call.1} parent=1 // pred_region
      %s30 = ssub.s32 128, 128
      %31 = vsyncadd [#allocation7], %s30
      %s33 = sshll.u32 [#allocation6], 4
      %s34 = int_to_ptr.vmem [resolvable:$true] %s33
      %36 = dma.hbm_to_vmem [thread:$0]  %s2, 128, %s34, [#allocation7]
    $region13: #{tpu_custom_call.1} parent=1 // pred_fallthru
      _
    // Predicated region
    $region14: #{tpu_custom_call.1} parent=1 // pred_check
      _
    $region15: #{tpu_custom_call.1} parent=1 // pred_check_branch
      %38 = sbr.rel (0) target = $region17
    $region16: #{tpu_custom_call.1} parent=1 // pred_region
      %s40 = ssub.s32 256, 256
      %41 = vsyncadd [#allocation7], %s40
      %s42 = sshll.u32 [#allocation8], 4
      %s43 = int_to_ptr.vmem [resolvable:$true] %s42
      %48 = dma.hbm_to_vmem [thread:$0]  %s3, 256, %s43, [#allocation7], 64, 64, 4
    $region17: #{tpu_custom_call.1} parent=1 // pred_fallthru
      _
    // Predicated region
    $region18: #{tpu_custom_call.1} parent=1 // pred_check
      _
    $region19: #{tpu_custom_call.1} parent=1 // pred_check_branch
      %50 = sbr.rel (0) target = $region21
    $region20: #{tpu_custom_call.1} parent=1 // pred_region
      _
    $region21: #{tpu_custom_call.1} parent=1 // pred_fallthru
      _
    // Predicated region
    $region22: #{tpu_custom_call.1} parent=1 // pred_check
      _
    $region23: #{tpu_custom_call.1} parent=1 // pred_check_branch
      %52 = sbr.rel (0) target = $region25
    $region24: #{tpu_custom_call.1} parent=1 // pred_region
      %53 = dma.done [#allocation4], 128
    $region25: #{tpu_custom_call.1} parent=1 // pred_fallthru
      _
    // Predicated region
    $region26: #{tpu_custom_call.1} parent=1 // pred_check
      _
    $region27: #{tpu_custom_call.1} parent=1 // pred_check_branch
      %55 = sbr.rel (0) target = $region29
    $region28: #{tpu_custom_call.1} parent=1 // pred_region
      %56 = dma.done [#allocation7], 128
    $region29: #{tpu_custom_call.1} parent=1 // pred_fallthru
      _
    // Predicated region
    $region30: #{tpu_custom_call.1} parent=1 // pred_check
      _
    $region31: #{tpu_custom_call.1} parent=1 // pred_check_branch
      %58 = sbr.rel (0) target = $region33
    $region32: #{tpu_custom_call.1} parent=1 // pred_region
      %59 = dma.done [#allocation7], 256
    $region33: #{tpu_custom_call.1} parent=1 // pred_fallthru
      _
    %v61 = vld [vmem:[#allocation2] sm:$0x1]
    %v62 = vxor.u32 %v61, 2147483648
    %v63 = vmul.f32 %v62, 1.442695
    %v64 = vpow.pop %v63
    %v65 = vadd.f32 %v64, 1.0
    %v66 = vrcp.pop %v65
    %v67 = vmul.f32 1.0, %v66
    %v68 = vadd.f32 %v67, 1e-07
    %v69 = vlog2.pop %v68
    %v70 = vmul.f32 %v69, 0.6931472
    %v71 = vsub.f32 1.0, %v67
    %v72 = vadd.f32 %v71, 1e-07
    %v73 = vlog2.pop %v72
    %v74 = vmul.f32 %v73, 0.6931472
    %v75 = vsub.f32 %v70, %v74
    %v76 = vrcp.pop %v71
    %v77 = vmul.f32 1.0, %v76
    %v78 = vld [vmem:[#allocation3] sm:$0xff]
    %v79 = vld [vmem:[#allocation6] sm:$0xff]
    %v80 = vadd.f32 %v79, 1e-07
    %v81 = vsub.f32 1.0, %v79
    %v82 = vadd.f32 %v81, 1e-07
    %v83 = vrcp.pop %v82
    %v84 = vmul.f32 %v80, %v83
    %v85 = vlog2.pop %v84
    %v86 = vmul.f32 %v85, 0.6931472
    %v88 = vlaneseq
    %v89 = vshrl.u32 %v88, 7
    %v90 = vsub.s32 0, %v89
    %v91 = vrot.slane %v75, %v90
    %92 = vset.pattern.permute.xlu0 0
    %93 = vperm.xlu0 %92, %v91
    %v94 = vpop.permute.xlu0 %93
    %v96 = vadd.f32 %v94, %v86
    %v97 = vmul.f32 %v96, 10.0
    %v98 = vsub.f32 0.0, %v97
    %v99 = vxor.u32 %v98, 2147483648
    %v100 = vmul.f32 %v99, 1.442695
    %v101 = vpow.pop %v100
    %v102 = vadd.f32 %v101, 1.0
    %v103 = vrcp.pop %v102
    %v104 = vmul.f32 1.0, %v103
    %v105 = vmul.f32 %v78, %v104
    %v106 = vpack.c.bf16 %v105, %v105
    %v107 = vld [vmem:[#allocation8] sm:$0xf]
    %v108 = vld [vmem:[#allocation8 + $0x4] sm:$0xf]
    %v109 = vld [vmem:[#allocation8 + $0x8] sm:$0xf]
    %v110 = vld [vmem:[#allocation8 + $0xc] sm:$0xf]
    %v115 = vunpack.c.l.b16 %v107
    %v116 = vunpack.c.l.b16 %v108
    %v117 = vunpack.c.l.b16 %v109
    %v118 = vunpack.c.l.b16 %v110
    %v119 = vpack.c.b16 %v116, %v115
    %v120 = vpack.c.b16 %v118, %v117
    %vm123 = vcmask 261120
    %v125 = vsel %vm123, %v106, 0
    %127 = vmatprep.subr.bf16.mxu0 0
    %128 = vmatpush1.bf16.msra.mxu0 %v119
    %129 = vmatprep.subr.bf16.mxu0 0
    %130 = vmatpush1.bf16.msra.mxu0 %v120
    %131 = vmatprep.subr.bf16.mxu0 0
    %132 = vmatpush1.bf16.msra.mxu0 0
    %133 = vmatprep.subr.bf16.mxu0 0
    %134 = vmatpush1.bf16.msra.mxu0 0
    %135 = vmatprep.subr.bf16.mxu0 0
    %136 = vmatpush1.bf16.msra.mxu0 0
    %137 = vmatprep.subr.bf16.mxu0 0
    %138 = vmatpush1.bf16.msra.mxu0 0
    %139 = vmatprep.subr.bf16.mxu0 0
    %140 = vmatpush1.bf16.msra.mxu0 0
    %141 = vmatprep.subr.bf16.mxu0 0
    %142 = vmatpush1.bf16.msra.mxu0 0
    %143 = vmatprep.subr.bf16.mxu0 0
    %144 = vmatpush1.bf16.msra.mxu0 0
    %145 = vmatprep.subr.bf16.mxu0 0
    %146 = vmatpush1.bf16.msra.mxu0 0
    %147 = vmatprep.subr.bf16.mxu0 0
    %148 = vmatpush1.bf16.msra.mxu0 0
    %149 = vmatprep.subr.bf16.mxu0 0
    %150 = vmatpush1.bf16.msra.mxu0 0
    %151 = vmatprep.subr.bf16.mxu0 0
    %152 = vmatpush1.bf16.msra.mxu0 0
    %153 = vmatprep.subr.bf16.mxu0 0
    %154 = vmatpush1.bf16.msra.mxu0 0
    %155 = vmatprep.subr.bf16.mxu0 0
    %156 = vmatpush1.bf16.msra.mxu0 0
    %157 = vmatprep.subr.bf16.mxu0 0
    %158 = vmatpush1.bf16.msra.mxu0 0
    %159 = vmatprep.mubr.bf16.mxu0 0
    %160 = vmatmul.mubr.bf16.gmra.mrb[0].mxu0 %v125
    %v161 = vpop.f32.mrb[0].mxu0
    %v162 = vadd.f32 0.0, %v161
    %v163 = vpop.f32.mrb[0].mxu0
    %v164 = vpop.f32.mrb[0].mxu0
    %v165 = vpop.f32.mrb[0].mxu0
    %166 = vdwg.mxu0
    %v168 = vlaneseq
    %v169 = vshrl.u32 %v168, 7
    %v170 = vsub.s32 0, %v169
    %v171 = vrot.slane %v77, %v170
    %172 = vset.pattern.permute.xlu0 0
    %173 = vperm.xlu0 %172, %v171
    %v174 = vpop.permute.xlu0 %173
    %v176 = vmul.f32 %v162, %v174
    %v177 = vld [vmem:[%s4] sm:$0x1]
    %v179 = vlaneseq
    %v180 = vshrl.u32 %v179, 7
    %v181 = vsub.s32 0, %v180
    %v182 = vrot.slane %v177, %v181
    %v184 = vadd.f32 %v176, %v182
    %185 = vst [vmem:[#allocation9] sm:$0xff] %v184
    // Predicated region
    $region34: #{tpu_custom_call.1} parent=1 // pred_check
      _
    $region35: #{tpu_custom_call.1} parent=1 // pred_check_branch
      %187 = sbr.rel (0) target = $region37
    $region36: #{tpu_custom_call.1} parent=1 // pred_region
      %s189 = ssub.s32 128, 128
      %190 = vsyncadd [#allocation5], %s189
      %s192 = sshll.u32 [#allocation9], 4
      %s193 = int_to_ptr.vmem [resolvable:$true] %s192
      %195 = dma.vmem_to_hbm [thread:$0]  %s193, 128, %s5, [#allocation5]
    $region37: #{tpu_custom_call.1} parent=1 // pred_fallthru
      _
    // Predicated region
    $region38: #{tpu_custom_call.1} parent=1 // pred_check
      _
    $region39: #{tpu_custom_call.1} parent=1 // pred_check_branch
      %197 = sbr.rel (0) target = $region41
    $region40: #{tpu_custom_call.1} parent=1 // pred_region
      %198 = dma.done [#allocation5], 128
    $region41: #{tpu_custom_call.1} parent=1 // pred_fallthru
      _
    %199 = vsyncpa [#allocation4], 1
    %200 = vsyncpa [#allocation7], 1
    %201 = vsyncpa [#allocation5], 1

</llo_original>
